<compile_context>
chip_gen: v7x
topology: tpu7x:2x2x1
jax: 0.10.0
libtpu: 0.0.40
codegen_flags: <defaults>
</compile_context>

<pallas_src>
import functools

import jax
import jax.numpy as jnp
from jax.experimental import pallas as pl
from jax.experimental.pallas import tpu as pltpu


def gat_kernel(h_ref, adj_ref, e1_ref, e2_ref, w_ref, out_ref, *, alpha):
    """One grid step = BT batch elements x one TQ-row tile of the attention.

    h_ref   : [BT*N, F_in]    bf16  (all rows of this batch block)
    adj_ref : [BT, TQ, N]     int8  (0/1 mask: query-row tile x all keys)
    e1_ref  : [BT, TQ, 1]     f32   (h . (W a1) for the query rows, precomputed)
    e2_ref  : [BT, 1,  N]     f32   (h . (W a2) for all keys, lane-dense row)
    w_ref   : [F_in, F_pad]   bf16  (W zero-padded to a lane-dense width)
    out_ref : [BT, TQ, F_pad] f32
    """
    bt, tq, n = adj_ref.shape

    # Single MXU matmul for all BT*N rows of this batch block
    # (bf16 inputs, f32 accumulation).
    wh = jnp.dot(h_ref[...], w_ref[...], preferred_element_type=jnp.float32)
    wh_bf = wh.astype(jnp.bfloat16)                      # [BT*N, F_pad]

    for b in range(bt):                                  # static, unrolled
        # e[i,j] = LeakyReLU(Wh[i].a1 + Wh[j].a2); the a1/a2 projections were
        # folded into the wrapper, so this is just a broadcast add.
        e = e1_ref[b] + e2_ref[b]                        # [TQ,1]+[1,N] -> [TQ,N]
        e = jnp.where(e > 0, e, alpha * e)               # LeakyReLU(alpha)

        mask = adj_ref[b] != 0                           # [TQ, N]
        logits = jnp.where(mask, e, -9e15)
        m = jnp.max(logits, axis=-1, keepdims=True)
        # Fused re-mask (the second torch.where of the reference): masked
        # lanes contribute exactly 0 to the denominator, just as exp(-9e15-m)
        # underflows to 0 in the f32 reference.
        ex = jnp.where(mask, jnp.exp(logits - m), 0.0)
        denom = jnp.sum(ex, axis=-1, keepdims=True)
        # A row with >=1 neighbor has denom >= 1 (its max entry contributes
        # exp(0)=1); a fully-masked row has denom == 0 and must yield all-zero
        # attention (the reference re-masks it to 0), so clamping the
        # denominator to 1 is exact in both cases.
        att = ex * pl.reciprocal(jnp.maximum(denom, 1.0), approx=True)

        # h_prime = att @ Wh   (bf16 MXU inputs, f32 accumulation).
        hp = jnp.dot(att.astype(jnp.bfloat16),
                     wh_bf[b * n:(b + 1) * n, :],
                     preferred_element_type=jnp.float32)  # [TQ, F_pad]

        # ELU (concat=True branch). Padded columns stay exactly 0.
        out_ref[b] = jnp.where(hp > 0, hp, jnp.exp(hp) - 1.0).astype(out_ref.dtype)


def _pick_tq(N, F_pad, budget_bytes=36 * 2**20):
    """Largest query-row tile whose per-step VMEM working set fits the budget:
    ~3 f32 [TQ,N] temporaries + double-buffered int8 adj block + resident
    [N,F_pad] Wh + double-buffered f32 [TQ,F_pad] output block. The budget is
    sized for v7x's 64 MiB VMEM; v5e/v6e (128 MiB) simply get extra headroom."""
    def est(tq):
        return tq * N * (3 * 4 + 2 * 1) + N * F_pad * 6 + 2 * tq * F_pad * 4

    if est(N) <= budget_bytes:
        return N
    for tq in (1024, 512, 256, 128, 64, 32, 16, 8):
        if N % tq == 0 and est(tq) <= budget_bytes:
            return tq
    return N  # fallback; raise vmem_limit_bytes if this ever triggers


def _pick_bt(B, N):
    """When N is small, block several batch elements per grid step so the
    h @ W matmul sees >= ~256 rows (fills the MXU M dimension and amortizes
    the ~0.35 us per-grid-step overhead)."""
    if N >= 256:
        target = 1
    else:
        target = max(1, min(B, 256 // N))
    for bt in range(target, 0, -1):
        if B % bt == 0 and ((bt * N) % 8 == 0 or bt == B):
            return bt
    return B  # full-batch block is always layout-legal


def gat_forward(h, adj, W, a, *, alpha=0.2):
    """Pallas forward of GraphAttentionLayer (concat=True branch)."""
    B, N, Fin = h.shape
    Fout = W.shape[1]
    assert a.shape == (2 * Fout, 1)

    h = h.astype(jnp.float32)
    W = W.astype(jnp.float32)
    a = a.astype(jnp.float32)

    # Lane-dense feature width: pad F_out up to a multiple of 128 so Wh,
    # h_prime and the output stores are full-vreg / unmasked.
    F_pad = ((Fout + 127) // 128) * 128

    # Fold the attention projections into tiny wrapper-side matmuls:
    #   e1[b,i] = Wh[b,i].a1 = h[b,i].(W @ a1),  e2[b,j] = h[b,j].(W @ a2)
    # This removes the two width-1 MXU matmuls (and the implicit transpose
    # for e2) from the kernel; e2 arrives already as a lane-dense row.
    proj = jnp.stack([W @ a[:Fout, 0], W @ a[Fout:, 0]], axis=1)   # [Fin, 2]
    e12 = h.reshape(B * N, Fin) @ proj                             # [B*N, 2]
    e1 = e12[:, 0].reshape(B, N, 1)
    e2 = e12[:, 1].reshape(B, 1, N)

    # bf16 MXU inputs (f32 accumulation in-kernel); int8 adjacency (the kernel
    # only needs `adj > 0`, and adj is the dominant HBM stream at large N).
    h2 = h.reshape(B * N, Fin).astype(jnp.bfloat16)
    W_pad = jnp.zeros((Fin, F_pad), jnp.float32).at[:, :Fout].set(W)
    W_pad = W_pad.astype(jnp.bfloat16)
    adj_i8 = (adj > 0).astype(jnp.int8)

    BT = _pick_bt(B, N)
    TQ = _pick_tq(N, F_pad)
    grid = (B // BT, N // TQ)

    kernel = functools.partial(gat_kernel, alpha=float(alpha))
    out = pl.pallas_call(
        kernel,
        out_shape=jax.ShapeDtypeStruct((B, N, F_pad), jnp.float32),
        grid=grid,
        in_specs=[
            pl.BlockSpec((BT * N, Fin), lambda bi, qi: (bi, 0)),       # h rows
            pl.BlockSpec((BT, TQ, N), lambda bi, qi: (bi, qi, 0)),     # adj
            pl.BlockSpec((BT, TQ, 1), lambda bi, qi: (bi, qi, 0)),     # e1
            pl.BlockSpec((BT, 1, N), lambda bi, qi: (bi, 0, 0)),       # e2
            pl.BlockSpec((Fin, F_pad), lambda bi, qi: (0, 0)),         # W
        ],
        out_specs=pl.BlockSpec((BT, TQ, F_pad), lambda bi, qi: (bi, qi, 0)),
        compiler_params=pltpu.CompilerParams(
            # Row tiles / batch blocks are independent work items: both axes
            # parallel so the v7x megacore (2 TCs) can split the grid.
            dimension_semantics=("parallel", "parallel"),
            # Raise the scoped VMEM limit above the 16/32 MiB defaults while
            # staying comfortably under v7x's 64 MiB physical VMEM.
            vmem_limit_bytes=48 * 1024 * 1024,
        ),
    )(h2, adj_i8, e1, e2, W_pad)

    return out[:, :, :Fout]


def gat_reference(h, adj, W, a, *, alpha=0.2):
    """Pure-JAX f32 reference mirroring the PyTorch forward exactly."""
    B, N, Fin = h.shape
    Fout = W.shape[1]
    Wh = (h.reshape(B * N, Fin) @ W).reshape(B, N, Fout)
    a_in = jnp.concatenate(
        [
            jnp.broadcast_to(Wh[:, :, None, :], (B, N, N, Fout)),
            jnp.broadcast_to(Wh[:, None, :, :], (B, N, N, Fout)),
        ],
        axis=-1,
    )
    e = jnp.squeeze(a_in @ a, axis=3)
    e = jnp.where(e > 0, e, alpha * e)
    att = jnp.where(adj > 0, e, -9e15)
    att = jax.nn.softmax(att, axis=2)
    att = jnp.where(adj > 0, att, 0.0)
    h_prime = att @ Wh
    return jnp.where(h_prime > 0, h_prime, jnp.exp(h_prime) - 1.0)


def xavier_uniform(key, shape, gain):
    fan_in, fan_out = shape[0], shape[1]
    bound = gain * jnp.sqrt(6.0 / (fan_in + fan_out))
    return jax.random.uniform(
        key, shape, dtype=jnp.float32, minval=-bound, maxval=bound
    )


if __name__ == "__main__":
    # Small shapes consistent with the module.
    B, N, F_IN, F_OUT = 2, 8, 16, 32
    ALPHA = 0.2  # LeakyReLU negative slope

    key = jax.random.PRNGKey(0)
    k_h, k_adj, k_w, k_a = jax.random.split(key, 4)

    h = jax.random.normal(k_h, (B, N, F_IN), dtype=jnp.float32)
    # Random 0/1 adjacency with self-loops.
    adj = (jax.random.uniform(k_adj, (B, N, N)) > 0.5).astype(jnp.float32)
    adj = jnp.maximum(adj, jnp.eye(N, dtype=jnp.float32)[None, :, :])

    # Deterministic init matching nn.init.xavier_uniform_(gain=1.414).
    W = xavier_uniform(k_w, (F_IN, F_OUT), gain=1.414)
    a = xavier_uniform(k_a, (2 * F_OUT, 1), gain=1.414)

    out = gat_forward(h, adj, W, a, alpha=ALPHA)
    out = jax.block_until_ready(out)

    ref = gat_reference(h, adj, W, a, alpha=ALPHA)
    assert out.shape == (B, N, F_OUT)
    max_err = float(jnp.max(jnp.abs(out - ref)))
    # bf16 MXU inputs -> loosened tolerance vs the pure-f32 reference.
    assert jnp.allclose(out, ref, atol=5e-2, rtol=5e-2), max_err

    print("KERNEL_OK")
</pallas_src>

<mosaic_0001>
module attributes {stable_mosaic.version = 11 : i64} {
  func.func @gat_kernel(%arg0: i32, %arg1: i32, %arg2: memref<16x16xbf16, #tpu.memory_space<vmem>>, %arg3: memref<2x8x8xi8, #tpu.memory_space<vmem>>, %arg4: memref<2x8x1xf32, #tpu.memory_space<vmem>>, %arg5: memref<2x1x8xf32, #tpu.memory_space<vmem>>, %arg6: memref<16x128xbf16, #tpu.memory_space<vmem>>, %arg7: memref<2x8x128xf32, #tpu.memory_space<vmem>>) attributes {dimension_semantics = [#tpu.dimension_semantics<parallel>, #tpu.dimension_semantics<parallel>], iteration_bounds = array<i64: 1, 1>, scalar_prefetch = 0 : i64, scratch_operands = 0 : i64, tpu.core_type = #tpu.core_type<tc>, window_params = [{transform_indices = @transform_0, window_bounds = array<i64: 16, 16>}, {transform_indices = @transform_1, window_bounds = array<i64: 2, 8, 8>}, {transform_indices = @transform_2, window_bounds = array<i64: 2, 8, 1>}, {transform_indices = @transform_3, window_bounds = array<i64: 2, 1, 8>}, {pipeline_mode = #tpu.pipeline_mode<synchronous>, transform_indices = @transform_4, window_bounds = array<i64: 16, 128>}, {transform_indices = @transform_5, window_bounds = array<i64: 2, 8, 128>}]} {
    %c0 = arith.constant 0 : index
    %c0_0 = arith.constant 0 : index
    %0 = vector.load %arg2[%c0, %c0_0] : memref<16x16xbf16, #tpu.memory_space<vmem>>, vector<16x16xbf16>
    %c0_1 = arith.constant 0 : index
    %c0_2 = arith.constant 0 : index
    %1 = vector.load %arg6[%c0_1, %c0_2] : memref<16x128xbf16, #tpu.memory_space<vmem>>, vector<16x128xbf16>
    %cst = arith.constant dense<0.000000e+00> : vector<16x128xf32>
    %2 = tpu.matmul %0, %1, %cst {dimension_numbers = #tpu.dot_dimension_numbers<[1], [0], [0], [1], [0, 0, 1, 1], [], []>} : vector<16x16xbf16>, vector<16x128xbf16>, vector<16x128xf32> -> vector<16x128xf32>
    %3 = arith.truncf %2 : vector<16x128xf32> to vector<16x128xbf16>
    %c0_3 = arith.constant 0 : index
    %c0_4 = arith.constant 0 : index
    %c0_5 = arith.constant 0 : index
    %4 = vector.load %arg4[%c0_3, %c0_4, %c0_5] : memref<2x8x1xf32, #tpu.memory_space<vmem>>, vector<1x8x1xf32>
    %5 = vector.shape_cast %4 : vector<1x8x1xf32> to vector<8x1xf32>
    %c0_6 = arith.constant 0 : index
    %c0_7 = arith.constant 0 : index
    %c0_8 = arith.constant 0 : index
    %6 = vector.load %arg5[%c0_6, %c0_7, %c0_8] : memref<2x1x8xf32, #tpu.memory_space<vmem>>, vector<1x1x8xf32>
    %7 = vector.shape_cast %6 : vector<1x1x8xf32> to vector<1x8xf32>
    %8 = vector.broadcast %5 : vector<8x1xf32> to vector<8x8xf32>
    %9 = vector.broadcast %7 : vector<1x8xf32> to vector<8x8xf32>
    %10 = arith.addf %8, %9 : vector<8x8xf32>
    %cst_9 = arith.constant 0.000000e+00 : f32
    %11 = vector.broadcast %cst_9 : f32 to vector<8x8xf32>
    %12 = arith.cmpf ogt, %10, %11 : vector<8x8xf32>
    %cst_10 = arith.constant 2.000000e-01 : f32
    %13 = vector.broadcast %cst_10 : f32 to vector<8x8xf32>
    %14 = arith.mulf %13, %10 : vector<8x8xf32>
    %15 = arith.select %12, %10, %14 : vector<8x8xi1>, vector<8x8xf32>
    %c0_11 = arith.constant 0 : index
    %c0_12 = arith.constant 0 : index
    %c0_13 = arith.constant 0 : index
    %16 = vector.load %arg3[%c0_11, %c0_12, %c0_13] : memref<2x8x8xi8, #tpu.memory_space<vmem>>, vector<1x8x8xi8>
    %17 = vector.shape_cast %16 : vector<1x8x8xi8> to vector<8x8xi8>
    %c0_i8 = arith.constant 0 : i8
    %18 = vector.broadcast %c0_i8 : i8 to vector<8x8xi8>
    %19 = arith.cmpi ne, %17, %18 : vector<8x8xi8>
    %cst_14 = arith.constant -9.000000e+15 : f32
    %20 = vector.broadcast %cst_14 : f32 to vector<8x8xf32>
    %21 = arith.select %19, %15, %20 : vector<8x8xi1>, vector<8x8xf32>
    %cst_15 = arith.constant dense<0xFF800000> : vector<8xf32>
    %22 = vector.multi_reduction <maximumf>, %21, %cst_15 [1] : vector<8x8xf32> to vector<8xf32>
    %23 = vector.shape_cast %22 : vector<8xf32> to vector<8x1xf32>
    %24 = vector.broadcast %23 : vector<8x1xf32> to vector<8x8xf32>
    %25 = arith.subf %21, %24 : vector<8x8xf32>
    %26 = math.exp %25 : vector<8x8xf32>
    %cst_16 = arith.constant 0.000000e+00 : f32
    %27 = vector.broadcast %cst_16 : f32 to vector<8x8xf32>
    %28 = arith.select %19, %26, %27 : vector<8x8xi1>, vector<8x8xf32>
    %cst_17 = arith.constant dense<0.000000e+00> : vector<8xf32>
    %29 = vector.multi_reduction <add>, %28, %cst_17 [1] : vector<8x8xf32> to vector<8xf32>
    %30 = vector.shape_cast %29 : vector<8xf32> to vector<8x1xf32>
    %cst_18 = arith.constant 1.000000e+00 : f32
    %31 = vector.broadcast %cst_18 : f32 to vector<8x1xf32>
    %32 = arith.maximumf %30, %31 : vector<8x1xf32>
    %33 = tpu.reciprocal %32 {approx = true} : vector<8x1xf32> -> vector<8x1xf32>
    %34 = vector.broadcast %33 : vector<8x1xf32> to vector<8x8xf32>
    %35 = arith.mulf %28, %34 : vector<8x8xf32>
    %36 = arith.truncf %35 : vector<8x8xf32> to vector<8x8xbf16>
    %37 = vector.extract_strided_slice %3 {offsets = [0, 0], sizes = [8, 128], strides = [1, 1]} : vector<16x128xbf16> to vector<8x128xbf16>
    %cst_19 = arith.constant dense<0.000000e+00> : vector<8x128xf32>
    %38 = tpu.matmul %36, %37, %cst_19 {dimension_numbers = #tpu.dot_dimension_numbers<[1], [0], [0], [1], [0, 0, 1, 1], [], []>} : vector<8x8xbf16>, vector<8x128xbf16>, vector<8x128xf32> -> vector<8x128xf32>
    %cst_20 = arith.constant 0.000000e+00 : f32
    %39 = vector.broadcast %cst_20 : f32 to vector<8x128xf32>
    %40 = arith.cmpf ogt, %38, %39 : vector<8x128xf32>
    %41 = math.exp %38 : vector<8x128xf32>
    %cst_21 = arith.constant 1.000000e+00 : f32
    %42 = vector.broadcast %cst_21 : f32 to vector<8x128xf32>
    %43 = arith.subf %41, %42 : vector<8x128xf32>
    %44 = arith.select %40, %38, %43 : vector<8x128xi1>, vector<8x128xf32>
    %c0_22 = arith.constant 0 : index
    %c0_23 = arith.constant 0 : index
    %c0_24 = arith.constant 0 : index
    %45 = vector.load %arg7[%c0_22, %c0_23, %c0_24] : memref<2x8x128xf32, #tpu.memory_space<vmem>>, vector<1x8x128xf32>
    %46 = vector.shape_cast %45 : vector<1x8x128xf32> to vector<8x128xf32>
    %47 = vector.shape_cast %44 : vector<8x128xf32> to vector<1x8x128xf32>
    tpu.vector_store %arg7[%c0_22, %c0_23, %c0_24], %47 {strides = array<i32>} : memref<2x8x128xf32, #tpu.memory_space<vmem>>, vector<1x8x128xf32>,
    %c1 = arith.constant 1 : index
    %c0_25 = arith.constant 0 : index
    %c0_26 = arith.constant 0 : index
    %48 = vector.load %arg4[%c1, %c0_25, %c0_26] : memref<2x8x1xf32, #tpu.memory_space<vmem>>, vector<1x8x1xf32>
    %49 = vector.shape_cast %48 : vector<1x8x1xf32> to vector<8x1xf32>
    %c1_27 = arith.constant 1 : index
    %c0_28 = arith.constant 0 : index
    %c0_29 = arith.constant 0 : index
    %50 = vector.load %arg5[%c1_27, %c0_28, %c0_29] : memref<2x1x8xf32, #tpu.memory_space<vmem>>, vector<1x1x8xf32>
    %51 = vector.shape_cast %50 : vector<1x1x8xf32> to vector<1x8xf32>
    %52 = vector.broadcast %49 : vector<8x1xf32> to vector<8x8xf32>
    %53 = vector.broadcast %51 : vector<1x8xf32> to vector<8x8xf32>
    %54 = arith.addf %52, %53 : vector<8x8xf32>
    %cst_30 = arith.constant 0.000000e+00 : f32
    %55 = vector.broadcast %cst_30 : f32 to vector<8x8xf32>
    %56 = arith.cmpf ogt, %54, %55 : vector<8x8xf32>
    %cst_31 = arith.constant 2.000000e-01 : f32
    %57 = vector.broadcast %cst_31 : f32 to vector<8x8xf32>
    %58 = arith.mulf %57, %54 : vector<8x8xf32>
    %59 = arith.select %56, %54, %58 : vector<8x8xi1>, vector<8x8xf32>
    %c1_32 = arith.constant 1 : index
    %c0_33 = arith.constant 0 : index
    %c0_34 = arith.constant 0 : index
    %60 = vector.load %arg3[%c1_32, %c0_33, %c0_34] : memref<2x8x8xi8, #tpu.memory_space<vmem>>, vector<1x8x8xi8>
    %61 = vector.shape_cast %60 : vector<1x8x8xi8> to vector<8x8xi8>
    %c0_i8_35 = arith.constant 0 : i8
    %62 = vector.broadcast %c0_i8_35 : i8 to vector<8x8xi8>
    %63 = arith.cmpi ne, %61, %62 : vector<8x8xi8>
    %cst_36 = arith.constant -9.000000e+15 : f32
    %64 = vector.broadcast %cst_36 : f32 to vector<8x8xf32>
    %65 = arith.select %63, %59, %64 : vector<8x8xi1>, vector<8x8xf32>
    %cst_37 = arith.constant dense<0xFF800000> : vector<8xf32>
    %66 = vector.multi_reduction <maximumf>, %65, %cst_37 [1] : vector<8x8xf32> to vector<8xf32>
    %67 = vector.shape_cast %66 : vector<8xf32> to vector<8x1xf32>
    %68 = vector.broadcast %67 : vector<8x1xf32> to vector<8x8xf32>
    %69 = arith.subf %65, %68 : vector<8x8xf32>
    %70 = math.exp %69 : vector<8x8xf32>
    %cst_38 = arith.constant 0.000000e+00 : f32
    %71 = vector.broadcast %cst_38 : f32 to vector<8x8xf32>
    %72 = arith.select %63, %70, %71 : vector<8x8xi1>, vector<8x8xf32>
    %cst_39 = arith.constant dense<0.000000e+00> : vector<8xf32>
    %73 = vector.multi_reduction <add>, %72, %cst_39 [1] : vector<8x8xf32> to vector<8xf32>
    %74 = vector.shape_cast %73 : vector<8xf32> to vector<8x1xf32>
    %cst_40 = arith.constant 1.000000e+00 : f32
    %75 = vector.broadcast %cst_40 : f32 to vector<8x1xf32>
    %76 = arith.maximumf %74, %75 : vector<8x1xf32>
    %77 = tpu.reciprocal %76 {approx = true} : vector<8x1xf32> -> vector<8x1xf32>
    %78 = vector.broadcast %77 : vector<8x1xf32> to vector<8x8xf32>
    %79 = arith.mulf %72, %78 : vector<8x8xf32>
    %80 = arith.truncf %79 : vector<8x8xf32> to vector<8x8xbf16>
    %81 = vector.extract_strided_slice %3 {offsets = [8, 0], sizes = [8, 128], strides = [1, 1]} : vector<16x128xbf16> to vector<8x128xbf16>
    %cst_41 = arith.constant dense<0.000000e+00> : vector<8x128xf32>
    %82 = tpu.matmul %80, %81, %cst_41 {dimension_numbers = #tpu.dot_dimension_numbers<[1], [0], [0], [1], [0, 0, 1, 1], [], []>} : vector<8x8xbf16>, vector<8x128xbf16>, vector<8x128xf32> -> vector<8x128xf32>
    %cst_42 = arith.constant 0.000000e+00 : f32
    %83 = vector.broadcast %cst_42 : f32 to vector<8x128xf32>
    %84 = arith.cmpf ogt, %82, %83 : vector<8x128xf32>
    %85 = math.exp %82 : vector<8x128xf32>
    %cst_43 = arith.constant 1.000000e+00 : f32
    %86 = vector.broadcast %cst_43 : f32 to vector<8x128xf32>
    %87 = arith.subf %85, %86 : vector<8x128xf32>
    %88 = arith.select %84, %82, %87 : vector<8x128xi1>, vector<8x128xf32>
    %c1_44 = arith.constant 1 : index
    %c0_45 = arith.constant 0 : index
    %c0_46 = arith.constant 0 : index
    %89 = vector.load %arg7[%c1_44, %c0_45, %c0_46] : memref<2x8x128xf32, #tpu.memory_space<vmem>>, vector<1x8x128xf32>
    %90 = vector.shape_cast %89 : vector<1x8x128xf32> to vector<8x128xf32>
    %91 = vector.shape_cast %88 : vector<8x128xf32> to vector<1x8x128xf32>
    tpu.vector_store %arg7[%c1_44, %c0_45, %c0_46], %91 {strides = array<i32>} : memref<2x8x128xf32, #tpu.memory_space<vmem>>, vector<1x8x128xf32>,
    return
  }
  func.func @transform_0(%arg0: i32, %arg1: i32) -> (i32, i32) {
    %c0_i32 = arith.constant 0 : i32
    %c0_i32_0 = arith.constant 0 : i32
    return %arg0, %c0_i32 : i32, i32
  }
  func.func @transform_1(%arg0: i32, %arg1: i32) -> (i32, i32, i32) {
    %c0_i32 = arith.constant 0 : i32
    %c0_i32_0 = arith.constant 0 : i32
    return %arg0, %arg1, %c0_i32 : i32, i32, i32
  }
  func.func @transform_2(%arg0: i32, %arg1: i32) -> (i32, i32, i32) {
    %c0_i32 = arith.constant 0 : i32
    %c0_i32_0 = arith.constant 0 : i32
    return %arg0, %arg1, %c0_i32 : i32, i32, i32
  }
  func.func @transform_3(%arg0: i32, %arg1: i32) -> (i32, i32, i32) {
    %c0_i32 = arith.constant 0 : i32
    %c0_i32_0 = arith.constant 0 : i32
    %c0_i32_1 = arith.constant 0 : i32
    return %arg0, %c0_i32, %c0_i32_0 : i32, i32, i32
  }
  func.func @transform_4(%arg0: i32, %arg1: i32) -> (i32, i32) {
    %c0_i32 = arith.constant 0 : i32
    %c0_i32_0 = arith.constant 0 : i32
    %c0_i32_1 = arith.constant 0 : i32
    return %c0_i32, %c0_i32_0 : i32, i32
  }
  func.func @transform_5(%arg0: i32, %arg1: i32) -> (i32, i32, i32) {
    %c0_i32 = arith.constant 0 : i32
    %c0_i32_0 = arith.constant 0 : i32
    return %arg0, %arg1, %c0_i32 : i32, i32, i32
  }
}

</mosaic_0001>

<llo_original>
// kernel: tpu_custom_call.1
$region0: #{tpu_custom_call.1}
  #allocation0 [shape = 'u32[]', space=smem, size = 0x4, offset = 0x4, fixed_abs, tag = 'smem constant byte address 0x4 - core index']
  #allocation1 [shape = 'u32[144,128]{1,0:T(1,128)}', space=vmem, size = 0x12000, scoped, tag = 'internal scratch']
  %s0 = inlined_call_operand.vmem [shape: bf16[16,16], index: 0, kind: input, shape index: {}]
  %s1 = inlined_call_operand.vmem [shape: s8[2,8,8], index: 1, kind: input, shape index: {}]
  %s2 = inlined_call_operand.vmem [shape: f32[2,8,1], index: 2, kind: input, shape index: {}]
  %s3 = inlined_call_operand.vmem [shape: f32[2,1,8], index: 3, kind: input, shape index: {}]
  %s4 = inlined_call_operand.vmem [shape: bf16[16,128], index: 4, kind: input, shape index: {}]
  %s5 = inlined_call_operand.hbm [shape: f32[2,8,128], index: 5, kind: output, shape index: {}]
  %s6 = sld [smem:[#allocation0]]
  $region30: #{tpu_custom_call.1} parent=0
    _
  %s8 = ssub.s32 1, %s6
  %s9 = scalar_select 0, %s8, %s6
  $region1: #{tpu_custom_call.1} parent=0
    #allocation2 [shape = 'u8[8192]{0}', space=vmem, size = 0x2000, scoped, tag = 'output window, operand 0, single buffered']
    #allocation3 [shape = 's32[1]{0}', space=sflag, size = 0x4, scoped, tag = 'scoped memory for tpu_custom_call.1']
    %10 = vsyncpa [#allocation3], 0
    // Predicated region
    $region2: #{tpu_custom_call.1} parent=1 // pred_check
      _
    $region3: #{tpu_custom_call.1} parent=1 // pred_check_branch
      %12 = sbr.rel (0) target = $region5
    $region4: #{tpu_custom_call.1} parent=1 // pred_region
      _
    $region5: #{tpu_custom_call.1} parent=1 // pred_fallthru
      _
    // Predicated region
    $region6: #{tpu_custom_call.1} parent=1 // pred_check
      _
    $region7: #{tpu_custom_call.1} parent=1 // pred_check_branch
      %14 = sbr.rel (0) target = $region9
    $region8: #{tpu_custom_call.1} parent=1 // pred_region
      _
    $region9: #{tpu_custom_call.1} parent=1 // pred_fallthru
      _
    // Predicated region
    $region10: #{tpu_custom_call.1} parent=1 // pred_check
      _
    $region11: #{tpu_custom_call.1} parent=1 // pred_check_branch
      %16 = sbr.rel (0) target = $region13
    $region12: #{tpu_custom_call.1} parent=1 // pred_region
      _
    $region13: #{tpu_custom_call.1} parent=1 // pred_fallthru
      _
    // Predicated region
    $region14: #{tpu_custom_call.1} parent=1 // pred_check
      _
    $region15: #{tpu_custom_call.1} parent=1 // pred_check_branch
      %18 = sbr.rel (0) target = $region17
    $region16: #{tpu_custom_call.1} parent=1 // pred_region
      _
    $region17: #{tpu_custom_call.1} parent=1 // pred_fallthru
      _
    // Predicated region
    $region18: #{tpu_custom_call.1} parent=1 // pred_check
      _
    $region19: #{tpu_custom_call.1} parent=1 // pred_check_branch
      %20 = sbr.rel (0) target = $region21
    $region20: #{tpu_custom_call.1} parent=1 // pred_region
      _
    $region21: #{tpu_custom_call.1} parent=1 // pred_fallthru
      _
    %v24 = vld [vmem:[%s0] sm:$0xf]
    %v25 = vld [vmem:[%s0 + $0x4] sm:$0xf]
    %v26 = vld [vmem:[%s4] sm:$0xf]
    %v27 = vld [vmem:[%s4 + $0x4] sm:$0xf]
    %v30 = vunpack.c.l.b16 %v24
    %v31 = vunpack.c.l.b16 %v25
    %v32 = vpack.c.b16 %v31, %v30
    %v35 = vunpack.c.l.b16 %v26
    %v36 = vunpack.c.l.b16 %v27
    %v37 = vpack.c.b16 %v36, %v35
    %vm39 = vcmask 130048
    %v41 = vsel %vm39, %v32, 0
    %43 = vmatprep.subr.bf16.mxu0 0
    %44 = vmatpush1.bf16.msra.mxu0 %v37
    %45 = vmatprep.subr.bf16.mxu0 0
    %46 = vmatpush1.bf16.msra.mxu0 0
    %47 = vmatprep.subr.bf16.mxu0 0
    %48 = vmatpush1.bf16.msra.mxu0 0
    %49 = vmatprep.subr.bf16.mxu0 0
    %50 = vmatpush1.bf16.msra.mxu0 0
    %51 = vmatprep.subr.bf16.mxu0 0
    %52 = vmatpush1.bf16.msra.mxu0 0
    %53 = vmatprep.subr.bf16.mxu0 0
    %54 = vmatpush1.bf16.msra.mxu0 0
    %55 = vmatprep.subr.bf16.mxu0 0
    %56 = vmatpush1.bf16.msra.mxu0 0
    %57 = vmatprep.subr.bf16.mxu0 0
    %58 = vmatpush1.bf16.msra.mxu0 0
    %59 = vmatprep.subr.bf16.mxu0 0
    %60 = vmatpush1.bf16.msra.mxu0 0
    %61 = vmatprep.subr.bf16.mxu0 0
    %62 = vmatpush1.bf16.msra.mxu0 0
    %63 = vmatprep.subr.bf16.mxu0 0
    %64 = vmatpush1.bf16.msra.mxu0 0
    %65 = vmatprep.subr.bf16.mxu0 0
    %66 = vmatpush1.bf16.msra.mxu0 0
    %67 = vmatprep.subr.bf16.mxu0 0
    %68 = vmatpush1.bf16.msra.mxu0 0
    %69 = vmatprep.subr.bf16.mxu0 0
    %70 = vmatpush1.bf16.msra.mxu0 0
    %71 = vmatprep.subr.bf16.mxu0 0
    %72 = vmatpush1.bf16.msra.mxu0 0
    %73 = vmatprep.subr.bf16.mxu0 0
    %74 = vmatpush1.bf16.msra.mxu0 0
    %75 = vmatprep.mubr.bf16.mxu0 0
    %76 = vmatmul.mubr.bf16.gmra.mrb[0].mxu0 %v41
    %v77 = vpop.f32.mrb[0].mxu0
    %v78 = vadd.f32 0.0, %v77
    %v79 = vpop.f32.mrb[0].mxu0
    %v80 = vpop.f32.mrb[0].mxu0
    %v81 = vadd.f32 0.0, %v80
    %v82 = vpop.f32.mrb[0].mxu0
    %83 = vdwg.mxu0
    %v84 = vpack.c.bf16 %v81, %v78
    %v85 = vld [vmem:[%s2] sm:$0xff]
    %v86 = vld [vmem:[%s3] sm:$0x1]
    %88 = vset.pattern.permute.xlu0 0
    %89 = vperm.xlu0 %88, %v85
    %v90 = vpop.permute.xlu0 %89
    %v93 = vlaneseq
    %v94 = vshrl.u32 %v93, 7
    %v95 = vsub.s32 0, %v94
    %v96 = vrot.slane %v86, %v95
    %v98 = vadd.f32 %v90, %v96
    %vm99 = vcmp.gt.f32.partialorder %v98, 0.0
    %v100 = vmul.f32 %v98, 0.2
    %v101 = vsel %vm99, %v98, %v100
    %v102 = vld [vmem:[%s1] sm:$0x3]
    %vm103 = vnez %v102
    %v104 = vsel %vm103, 16843009, 0
    %v105 = vunpack.c.0.s8 %v104
    %vm106 = vcmp.ne.s32.totalorder %v105, 0
    %v107 = vsel %vm106, %v101, -9e+15
    %vm108 = vcmask 64512
    %v109 = vsel %vm108, %v107, -inf
    %110 = vmax.xlane.f32.xlu0 %v109
    %v111 = vpop.xlane.xlu0 %110
    %v112 = vsub.f32 %v107, %v111
    %v113 = vmul.f32 %v112, 1.442695
    %v114 = vpow.pop %v113
    %v115 = vsel %vm106, %v114, 0.0
    %v116 = vsel %vm108, %v115, 0.0
    %117 = vadd.xlane.f32.xlu0 %v116
    %v118 = vpop.xlane.xlu0 %117
    %v119 = vmax.f32 %v118, 1.0
    %v120 = vrcp.pop %v119
    %v121 = vmul.f32 %v115, %v120
    %v122 = vpack.c.bf16 %v121, %v121
    %v124 = vsel %vm108, %v122, 0
    %vm126 = vcmask 1043456
    %v128 = vsel %vm126, %v84, 0
    %130 = vmatprep.subr.bf16.mxu0 0
    %131 = vmatpush1.bf16.msra.mxu0 %v128
    %132 = vmatprep.subr.bf16.mxu0 0
    %133 = vmatpush1.bf16.msra.mxu0 0
    %134 = vmatprep.subr.bf16.mxu0 0
    %135 = vmatpush1.bf16.msra.mxu0 0
    %136 = vmatprep.subr.bf16.mxu0 0
    %137 = vmatpush1.bf16.msra.mxu0 0
    %138 = vmatprep.subr.bf16.mxu0 0
    %139 = vmatpush1.bf16.msra.mxu0 0
    %140 = vmatprep.subr.bf16.mxu0 0
    %141 = vmatpush1.bf16.msra.mxu0 0
    %142 = vmatprep.subr.bf16.mxu0 0
    %143 = vmatpush1.bf16.msra.mxu0 0
    %144 = vmatprep.subr.bf16.mxu0 0
    %145 = vmatpush1.bf16.msra.mxu0 0
    %146 = vmatprep.subr.bf16.mxu0 0
    %147 = vmatpush1.bf16.msra.mxu0 0
    %148 = vmatprep.subr.bf16.mxu0 0
    %149 = vmatpush1.bf16.msra.mxu0 0
    %150 = vmatprep.subr.bf16.mxu0 0
    %151 = vmatpush1.bf16.msra.mxu0 0
    %152 = vmatprep.subr.bf16.mxu0 0
    %153 = vmatpush1.bf16.msra.mxu0 0
    %154 = vmatprep.subr.bf16.mxu0 0
    %155 = vmatpush1.bf16.msra.mxu0 0
    %156 = vmatprep.subr.bf16.mxu0 0
    %157 = vmatpush1.bf16.msra.mxu0 0
    %158 = vmatprep.subr.bf16.mxu0 0
    %159 = vmatpush1.bf16.msra.mxu0 0
    %160 = vmatprep.subr.bf16.mxu0 0
    %161 = vmatpush1.bf16.msra.mxu0 0
    %162 = vmatprep.mubr.bf16.mxu0 0
    %163 = vmatmul.mubr.bf16.gmra.mrb[0].mxu0 %v124
    %v164 = vpop.f32.mrb[0].mxu0
    %v165 = vadd.f32 0.0, %v164
    %v166 = vpop.f32.mrb[0].mxu0
    %v167 = vpop.f32.mrb[0].mxu0
    %v168 = vpop.f32.mrb[0].mxu0
    %169 = vdwg.mxu0
    %vm170 = vcmp.gt.f32.partialorder %v165, 0.0
    %v171 = vmul.f32 %v165, 1.442695
    %v172 = vpow.pop %v171
    %v173 = vsub.f32 %v172, 1.0
    %v174 = vsel %vm170, %v165, %v173
    %175 = vst [vmem:[#allocation2] sm:$0xff] %v174
    %s176 = scalar_lea.vmem %s2, 8
    %v177 = vld [vmem:[%s176] sm:$0xff]
    %s178 = scalar_lea.vmem %s3, 1
    %v179 = vld [vmem:[%s178] sm:$0x1]
    %181 = vset.pattern.permute.xlu0 0
    %182 = vperm.xlu0 %181, %v177
    %v183 = vpop.permute.xlu0 %182
    %v186 = vlaneseq
    %v187 = vshrl.u32 %v186, 7
    %v188 = vsub.s32 0, %v187
    %v189 = vrot.slane %v179, %v188
    %v191 = vadd.f32 %v183, %v189
    %vm192 = vcmp.gt.f32.partialorder %v191, 0.0
    %v193 = vmul.f32 %v191, 0.2
    %v194 = vsel %vm192, %v191, %v193
    %s195 = scalar_lea.vmem %s1, 2
    %v196 = vld [vmem:[%s195] sm:$0x3]
    %vm197 = vnez %v196
    %v198 = vsel %vm197, 16843009, 0
    %v199 = vunpack.c.0.s8 %v198
    %vm200 = vcmp.ne.s32.totalorder %v199, 0
    %v201 = vsel %vm200, %v194, -9e+15
    %v202 = vsel %vm108, %v201, -inf
    %203 = vmax.xlane.f32.xlu0 %v202
    %v204 = vpop.xlane.xlu0 %203
    %v205 = vsub.f32 %v201, %v204
    %v206 = vmul.f32 %v205, 1.442695
    %v207 = vpow.pop %v206
    %v208 = vsel %vm200, %v207, 0.0
    %v209 = vsel %vm108, %v208, 0.0
    %210 = vadd.xlane.f32.xlu0 %v209
    %v211 = vpop.xlane.xlu0 %210
    %v212 = vmax.f32 %v211, 1.0
    %v213 = vrcp.pop %v212
    %v214 = vmul.f32 %v208, %v213
    %v215 = vpack.c.bf16 %v214, %v214
    %v217 = vrot.slane %v84, 4
    %v219 = vsel %vm108, %v215, 0
    %v222 = vsel %vm126, %v217, 0
    %224 = vmatprep.subr.bf16.mxu0 0
    %225 = vmatpush1.bf16.msra.mxu0 %v222
    %226 = vmatprep.subr.bf16.mxu0 0
    %227 = vmatpush1.bf16.msra.mxu0 0
    %228 = vmatprep.subr.bf16.mxu0 0
    %229 = vmatpush1.bf16.msra.mxu0 0
    %230 = vmatprep.subr.bf16.mxu0 0
    %231 = vmatpush1.bf16.msra.mxu0 0
    %232 = vmatprep.subr.bf16.mxu0 0
    %233 = vmatpush1.bf16.msra.mxu0 0
    %234 = vmatprep.subr.bf16.mxu0 0
    %235 = vmatpush1.bf16.msra.mxu0 0
    %236 = vmatprep.subr.bf16.mxu0 0
    %237 = vmatpush1.bf16.msra.mxu0 0
    %238 = vmatprep.subr.bf16.mxu0 0
    %239 = vmatpush1.bf16.msra.mxu0 0
    %240 = vmatprep.subr.bf16.mxu0 0
    %241 = vmatpush1.bf16.msra.mxu0 0
    %242 = vmatprep.subr.bf16.mxu0 0
    %243 = vmatpush1.bf16.msra.mxu0 0
    %244 = vmatprep.subr.bf16.mxu0 0
    %245 = vmatpush1.bf16.msra.mxu0 0
    %246 = vmatprep.subr.bf16.mxu0 0
    %247 = vmatpush1.bf16.msra.mxu0 0
    %248 = vmatprep.subr.bf16.mxu0 0
    %249 = vmatpush1.bf16.msra.mxu0 0
    %250 = vmatprep.subr.bf16.mxu0 0
    %251 = vmatpush1.bf16.msra.mxu0 0
    %252 = vmatprep.subr.bf16.mxu0 0
    %253 = vmatpush1.bf16.msra.mxu0 0
    %254 = vmatprep.subr.bf16.mxu0 0
    %255 = vmatpush1.bf16.msra.mxu0 0
    %256 = vmatprep.mubr.bf16.mxu0 0
    %257 = vmatmul.mubr.bf16.gmra.mrb[0].mxu0 %v219
    %v258 = vpop.f32.mrb[0].mxu0
    %v259 = vadd.f32 0.0, %v258
    %v260 = vpop.f32.mrb[0].mxu0
    %v261 = vpop.f32.mrb[0].mxu0
    %v262 = vpop.f32.mrb[0].mxu0
    %263 = vdwg.mxu0
    %vm264 = vcmp.gt.f32.partialorder %v259, 0.0
    %v265 = vmul.f32 %v259, 1.442695
    %v266 = vpow.pop %v265
    %v267 = vsub.f32 %v266, 1.0
    %v268 = vsel %vm264, %v259, %v267
    %s269 = scalar_lea.vmem [#allocation2], 8
    %270 = vst [vmem:[%s269] sm:$0xff] %v268
    // Predicated region
    $region22: #{tpu_custom_call.1} parent=1 // pred_check
      _
    $region23: #{tpu_custom_call.1} parent=1 // pred_check_branch
      %272 = sbr.rel (0) target = $region25
    $region24: #{tpu_custom_call.1} parent=1 // pred_region
      %s274 = ssub.s32 256, 256
      %275 = vsyncadd [#allocation3], %s274
      %s276 = sshll.u32 [#allocation2], 4
      %s277 = int_to_ptr.vmem [resolvable:$true] %s276
      %282 = dma.vmem_to_hbm [thread:$0]  %s277, 256, %s5, [#allocation3], 128, 128, 8
    $region25: #{tpu_custom_call.1} parent=1 // pred_fallthru
      _
    // Predicated region
    $region26: #{tpu_custom_call.1} parent=1 // pred_check
      _
    $region27: #{tpu_custom_call.1} parent=1 // pred_check_branch
      %284 = sbr.rel (0) target = $region29
    $region28: #{tpu_custom_call.1} parent=1 // pred_region
      %285 = dma.done [#allocation3], 256
    $region29: #{tpu_custom_call.1} parent=1 // pred_fallthru
      _
    %286 = vsyncpa [#allocation3], 1

</llo_original>
